<compile_context>
chip_gen: v5e
topology: v5e:2x2
jax: 0.10.0
libtpu: 0.0.40
codegen_flags: <defaults>
</compile_context>

<pallas_src>
import functools

import jax
import jax.numpy as jnp
from jax.experimental import pallas as pl
from jax.experimental.pallas import tpu as pltpu


# ---------------------------------------------------------------------------
# Bilinear (align_corners=True) interpolation matrix: out = U @ in  (per axis)
# ---------------------------------------------------------------------------
def bilinear_matrix(n_in: int, n_out: int) -> jnp.ndarray:
    if n_in == 1:
        return jnp.ones((n_out, 1), jnp.float32)
    src = jnp.arange(n_out, dtype=jnp.float32) * (n_in - 1) / (n_out - 1)
    i0 = jnp.clip(jnp.floor(src).astype(jnp.int32), 0, n_in - 2)
    frac = src - i0.astype(jnp.float32)
    rows = jnp.arange(n_out)
    u = jnp.zeros((n_out, n_in), jnp.float32)
    u = u.at[rows, i0].add(1.0 - frac)
    u = u.at[rows, i0 + 1].add(frac)
    return u


# ---------------------------------------------------------------------------
# Banded conv matrices for the lane-packed layout.
#   A[kh, (j+kw-1)*Cin + ci, j*Cout + co] = w[kh, kw, ci, co]
# (out-of-range kw taps are dropped -> zero padding in W is folded in).
# The 3x3 conv then becomes: out = sum_kh  rows_shifted_by(kh-1) @ A[kh].
# ---------------------------------------------------------------------------
def conv_band_matrices(w_hwio: jnp.ndarray, w_out: int) -> jnp.ndarray:
    _, _, cin, cout = w_hwio.shape
    mats = []
    for kh in range(3):
        a = jnp.zeros((w_out * cin, w_out * cout), jnp.float32)
        for kw in range(3):
            # shift[j + kw - 1, j] = 1  (rows outside [0, w_out) dropped)
            shift = jnp.eye(w_out, k=1 - kw, dtype=jnp.float32)
            a = a + jnp.kron(shift, w_hwio[kh, kw].astype(jnp.float32))
        mats.append(a)
    return jnp.stack(mats)  # (3, w_out*Cin, w_out*Cout)


# ---------------------------------------------------------------------------
# Fused DecoderBlock kernel (one batch element per grid step).
# All activations are lane-packed 2D tiles: (rows, width*channels).
# ---------------------------------------------------------------------------
def _decoder_block_kernel(*refs, has_skip):
    if has_skip:
        (x_ref, skip_ref, uh_ref, mw_ref, a1u_ref, a1s_ref, a2_ref,
         s1_ref, b1_ref, s2_ref, b2_ref, o_ref) = refs
    else:
        (x_ref, uh_ref, mw_ref, a1u_ref, a2_ref,
         s1_ref, b1_ref, s2_ref, b2_ref, o_ref) = refs
        skip_ref = a1s_ref = None

    f32 = jnp.float32
    cdt = uh_ref.dtype            # matmul operand dtype (f32 or bf16)
    hout = o_ref.shape[1]         # 2H output rows

    def pad_rows(y):
        # 1-row zero halo on top/bottom, built in VMEM (no HBM pad pass).
        zr = jnp.zeros((1, y.shape[1]), y.dtype)
        return jnp.concatenate([zr, y, zr], axis=0)

    # ---- bilinear x2 upsample (align_corners=True), fully VMEM resident ----
    t = jnp.dot(uh_ref[...], x_ref[0].astype(cdt),
                preferred_element_type=f32)                       # (2H, W*Cx)
    up = jnp.dot(t.astype(cdt), mw_ref[...],
                 preferred_element_type=f32)                      # (2H, 2W*Cx)

    # ---- conv1 (3x3, pad=1) with fused skip-concat, + folded BN + ReLU -----
    pu = pad_rows(up.astype(cdt))                                 # (2H+2, 2W*Cx)
    acc = jnp.zeros(o_ref.shape[1:], f32)                         # (2H, 2W*Cout)
    for kh in range(3):                                           # 3 lane-dense matmuls
        acc = acc + jnp.dot(pu[kh:kh + hout, :], a1u_ref[kh],
                            preferred_element_type=f32)
    if has_skip:
        ps = pad_rows(skip_ref[0].astype(cdt))                    # (2H+2, 2W*Cs)
        for kh in range(3):
            acc = acc + jnp.dot(ps[kh:kh + hout, :], a1s_ref[kh],
                                preferred_element_type=f32)
    y1 = jnp.maximum(acc * s1_ref[...] + b1_ref[...], 0.0)        # f32 epilogue

    # ---- conv2 (3x3, pad=1) + folded BN + ReLU ------------------------------
    p2 = pad_rows(y1.astype(cdt))                                 # (2H+2, 2W*Cout)
    acc2 = jnp.zeros(o_ref.shape[1:], f32)
    for kh in range(3):
        acc2 = acc2 + jnp.dot(p2[kh:kh + hout, :], a2_ref[kh],
                              preferred_element_type=f32)
    y2 = jnp.maximum(acc2 * s2_ref[...] + b2_ref[...], 0.0)

    o_ref[0] = y2.astype(o_ref.dtype)                             # lane-dense store


# ---------------------------------------------------------------------------
# DecoderBlock forward (NCHW in / NCHW out, like the PyTorch module)
# ---------------------------------------------------------------------------
def decoder_block_forward(x_nchw, skip_nchw, params,
                          compute_dtype=jnp.float32):
    n, cx, h, w = x_nchw.shape
    ho, wo = 2 * h, 2 * w
    has_skip = skip_nchw is not None
    cs = skip_nchw.shape[1] if has_skip else 0

    w1 = params["w1_hwio"]                       # (3, 3, Cx+Cs, Cout)
    w2 = params["w2_hwio"]                       # (3, 3, Cout, Cout)
    cout = w1.shape[3]
    assert w1.shape[2] == cx + cs

    cdt = compute_dtype

    # Lane-packed activations: (N, rows, width*channels), channels fastest.
    x_p = jnp.transpose(x_nchw, (0, 2, 3, 1)).reshape(n, h, w * cx).astype(cdt)

    # Bilinear x2 operators for the packed layout (no transposes needed).
    uh_c = bilinear_matrix(h, ho).astype(cdt)                            # (2H, H)
    mw_c = jnp.kron(bilinear_matrix(w, wo).T,
                    jnp.eye(cx, dtype=jnp.float32)).astype(cdt)          # (W*Cx, 2W*Cx)

    # Banded conv weights (kw taps + Cin folded into K; W padding folded in).
    a1u_c = conv_band_matrices(w1[:, :, :cx, :], wo).astype(cdt)         # (3, 2W*Cx, 2W*Cout)
    a2_c = conv_band_matrices(w2, wo).astype(cdt)                        # (3, 2W*Cout, 2W*Cout)

    # Folded-BN scale/shift, tiled to the packed lane layout (kept in f32).
    def tile_lane(v):
        return jnp.tile(v.astype(jnp.float32), wo).reshape(1, wo * cout)
    s1p, b1p = tile_lane(params["s1"]), tile_lane(params["b1"])
    s2p, b2p = tile_lane(params["s2"]), tile_lane(params["b2"])

    operands = [x_p]
    in_specs = [pl.BlockSpec((1, h, w * cx), lambda i: (i, 0, 0))]
    if has_skip:
        skip_p = (jnp.transpose(skip_nchw, (0, 2, 3, 1))
                  .reshape(n, ho, wo * cs).astype(cdt))
        a1s_c = conv_band_matrices(w1[:, :, cx:, :], wo).astype(cdt)
        operands.append(skip_p)
        in_specs.append(pl.BlockSpec((1, ho, wo * cs), lambda i: (i, 0, 0)))

    operands += [uh_c, mw_c, a1u_c]
    in_specs += [
        pl.BlockSpec((ho, h), lambda i: (0, 0)),
        pl.BlockSpec((w * cx, wo * cx), lambda i: (0, 0)),
        pl.BlockSpec((3, wo * cx, wo * cout), lambda i: (0, 0, 0)),
    ]
    if has_skip:
        operands.append(a1s_c)
        in_specs.append(pl.BlockSpec((3, wo * cs, wo * cout), lambda i: (0, 0, 0)))
    operands += [a2_c, s1p, b1p, s2p, b2p]
    in_specs += [
        pl.BlockSpec((3, wo * cout, wo * cout), lambda i: (0, 0, 0)),
        pl.BlockSpec((1, wo * cout), lambda i: (0, 0)),
        pl.BlockSpec((1, wo * cout), lambda i: (0, 0)),
        pl.BlockSpec((1, wo * cout), lambda i: (0, 0)),
        pl.BlockSpec((1, wo * cout), lambda i: (0, 0)),
    ]

    kernel = functools.partial(_decoder_block_kernel, has_skip=has_skip)
    out_p = pl.pallas_call(
        kernel,
        out_shape=jax.ShapeDtypeStruct((n, ho, wo * cout), x_nchw.dtype),
        grid=(n,),
        in_specs=in_specs,
        out_specs=pl.BlockSpec((1, ho, wo * cout), lambda i: (i, 0, 0)),
        compiler_params=pltpu.CompilerParams(dimension_semantics=("parallel",)),
    )(*operands)

    # Un-pack lanes: (N, 2H, 2W*Cout) -> NHWC -> NCHW (layout glue only).
    return jnp.transpose(out_p.reshape(n, ho, wo, cout), (0, 3, 1, 2))


# ---------------------------------------------------------------------------
# Pure-JAX reference (HIGHEST precision so the f32 kernel can be checked tightly)
# ---------------------------------------------------------------------------
def reference_forward(x_nchw, skip_nchw, params):
    n, c, h, w = x_nchw.shape
    hp = jax.lax.Precision.HIGHEST
    uh = bilinear_matrix(h, 2 * h)
    uw = bilinear_matrix(w, 2 * w)
    up = jnp.einsum("oh,nchw->ncow", uh, x_nchw, precision=hp)
    up = jnp.einsum("pw,ncow->ncop", uw, up, precision=hp)
    z = up if skip_nchw is None else jnp.concatenate([up, skip_nchw], axis=1)

    def cbr(z, w_oihw, scale, shift):
        y = jax.lax.conv_general_dilated(
            z, w_oihw, window_strides=(1, 1), padding=((1, 1), (1, 1)),
            dimension_numbers=("NCHW", "OIHW", "NCHW"), precision=hp)
        y = y * scale[None, :, None, None] + shift[None, :, None, None]
        return jnp.maximum(y, 0.0)

    z = cbr(z, params["w1_oihw"], params["s1"], params["b1"])
    z = cbr(z, params["w2_oihw"], params["s2"], params["b2"])
    return z


def fold_bn(gamma, beta, mean, var, eps=1e-5):
    scale = gamma / jnp.sqrt(var + eps)
    shift = beta - mean * scale
    return scale, shift


if __name__ == "__main__":
    key = jax.random.PRNGKey(0)
    ks = jax.random.split(key, 12)

    # DecoderBlock(in_channels=8, out_channels=8, skip_channels=4-ish):
    # x has 4 channels, skip has 4 channels -> conv1 sees 8 after upsample+concat.
    N, Cx, H, W = 2, 4, 8, 8
    Cs, Cout = 4, 8
    Cin = Cx + Cs

    x = jax.random.normal(ks[0], (N, Cx, H, W), jnp.float32)            # NCHW
    skip = jax.random.normal(ks[1], (N, Cs, 2 * H, 2 * W), jnp.float32)

    # Deterministic synthetic parameters (shapes follow the PyTorch module).
    w1 = jax.random.normal(ks[2], (Cout, Cin, 3, 3), jnp.float32) * 0.1   # OIHW
    w2 = jax.random.normal(ks[3], (Cout, Cout, 3, 3), jnp.float32) * 0.1  # OIHW
    g1 = 0.75 + 0.5 * jax.random.uniform(ks[4], (Cout,), jnp.float32)
    be1 = jax.random.normal(ks[5], (Cout,), jnp.float32) * 0.1
    g2 = 0.75 + 0.5 * jax.random.uniform(ks[6], (Cout,), jnp.float32)
    be2 = jax.random.normal(ks[7], (Cout,), jnp.float32) * 0.1
    m1 = jax.random.normal(ks[8], (Cout,), jnp.float32) * 0.1
    v1 = 0.75 + 0.5 * jax.random.uniform(ks[9], (Cout,), jnp.float32)
    m2 = jax.random.normal(ks[10], (Cout,), jnp.float32) * 0.1
    v2 = 0.75 + 0.5 * jax.random.uniform(ks[11], (Cout,), jnp.float32)

    s1, sh1 = fold_bn(g1, be1, m1, v1)
    s2, sh2 = fold_bn(g2, be2, m2, v2)

    params = {
        "w1_oihw": w1, "w2_oihw": w2,
        # HWIO for the lane-packed Pallas kernel.
        "w1_hwio": jnp.transpose(w1, (2, 3, 1, 0)),
        "w2_hwio": jnp.transpose(w2, (2, 3, 1, 0)),
        "s1": s1, "b1": sh1, "s2": s2, "b2": sh2,
    }

    ref = jax.block_until_ready(reference_forward(x, skip, params))

    # f32 path: must match the (HIGHEST-precision) XLA reference tightly.
    out = jax.block_until_ready(
        decoder_block_forward(x, skip, params, compute_dtype=jnp.float32))
    assert out.shape == (N, Cout, 2 * H, 2 * W), out.shape
    err32 = float(jnp.max(jnp.abs(out - ref)))
    assert err32 < 1e-3, f"f32 kernel mismatch vs reference, max_err={err32}"

    # bf16 MXU-operand path (f32 accumulation + epilogue): percent-level check.
    out16 = jax.block_until_ready(
        decoder_block_forward(x, skip, params, compute_dtype=jnp.bfloat16))
    rel16 = float(jnp.max(jnp.abs(out16 - ref)) / jnp.max(jnp.abs(ref)))
    assert rel16 < 5e-2, f"bf16 kernel mismatch vs reference, rel_err={rel16}"

    print("KERNEL_OK")
</pallas_src>

<mosaic_0001>
module attributes {stable_mosaic.version = 11 : i64} {
  func.func @_decoder_block_kernel(%arg0: i32, %arg1: memref<1x8x32xf32, #tpu.memory_space<vmem>>, %arg2: memref<1x16x64xf32, #tpu.memory_space<vmem>>, %arg3: memref<16x8xf32, #tpu.memory_space<vmem>>, %arg4: memref<32x64xf32, #tpu.memory_space<vmem>>, %arg5: memref<3x64x128xf32, #tpu.memory_space<vmem>>, %arg6: memref<3x64x128xf32, #tpu.memory_space<vmem>>, %arg7: memref<3x128x128xf32, #tpu.memory_space<vmem>>, %arg8: memref<1x128xf32, #tpu.memory_space<vmem>>, %arg9: memref<1x128xf32, #tpu.memory_space<vmem>>, %arg10: memref<1x128xf32, #tpu.memory_space<vmem>>, %arg11: memref<1x128xf32, #tpu.memory_space<vmem>>, %arg12: memref<1x16x128xf32, #tpu.memory_space<vmem>>) attributes {dimension_semantics = [#tpu.dimension_semantics<parallel>], iteration_bounds = array<i64: 2>, scalar_prefetch = 0 : i64, scratch_operands = 0 : i64, tpu.core_type = #tpu.core_type<tc>, window_params = [{transform_indices = @transform_0, window_bounds = array<i64: 1, 8, 32>}, {transform_indices = @transform_1, window_bounds = array<i64: 1, 16, 64>}, {pipeline_mode = #tpu.pipeline_mode<synchronous>, transform_indices = @transform_2, window_bounds = array<i64: 16, 8>}, {pipeline_mode = #tpu.pipeline_mode<synchronous>, transform_indices = @transform_3, window_bounds = array<i64: 32, 64>}, {pipeline_mode = #tpu.pipeline_mode<synchronous>, transform_indices = @transform_4, window_bounds = array<i64: 3, 64, 128>}, {pipeline_mode = #tpu.pipeline_mode<synchronous>, transform_indices = @transform_5, window_bounds = array<i64: 3, 64, 128>}, {pipeline_mode = #tpu.pipeline_mode<synchronous>, transform_indices = @transform_6, window_bounds = array<i64: 3, 128, 128>}, {pipeline_mode = #tpu.pipeline_mode<synchronous>, transform_indices = @transform_7, window_bounds = array<i64: 1, 128>}, {pipeline_mode = #tpu.pipeline_mode<synchronous>, transform_indices = @transform_8, window_bounds = array<i64: 1, 128>}, {pipeline_mode = #tpu.pipeline_mode<synchronous>, transform_indices = @transform_9, window_bounds = array<i64: 1, 128>}, {pipeline_mode = #tpu.pipeline_mode<synchronous>, transform_indices = @transform_10, window_bounds = array<i64: 1, 128>}, {transform_indices = @transform_11, window_bounds = array<i64: 1, 16, 128>}]} {
    %c0 = arith.constant 0 : index
    %c0_0 = arith.constant 0 : index
    %0 = vector.load %arg3[%c0, %c0_0] : memref<16x8xf32, #tpu.memory_space<vmem>>, vector<16x8xf32>
    %c0_1 = arith.constant 0 : index
    %c0_2 = arith.constant 0 : index
    %c0_3 = arith.constant 0 : index
    %1 = vector.load %arg1[%c0_1, %c0_2, %c0_3] : memref<1x8x32xf32, #tpu.memory_space<vmem>>, vector<1x8x32xf32>
    %2 = vector.shape_cast %1 : vector<1x8x32xf32> to vector<8x32xf32>
    %cst = arith.constant dense<0.000000e+00> : vector<16x32xf32>
    %3 = tpu.matmul %0, %2, %cst {dimension_numbers = #tpu.dot_dimension_numbers<[1], [0], [0], [1], [0, 0, 1, 1], [], []>} : vector<16x8xf32>, vector<8x32xf32>, vector<16x32xf32> -> vector<16x32xf32>
    %c0_4 = arith.constant 0 : index
    %c0_5 = arith.constant 0 : index
    %4 = vector.load %arg4[%c0_4, %c0_5] : memref<32x64xf32, #tpu.memory_space<vmem>>, vector<32x64xf32>
    %cst_6 = arith.constant dense<0.000000e+00> : vector<16x64xf32>
    %5 = tpu.matmul %3, %4, %cst_6 {dimension_numbers = #tpu.dot_dimension_numbers<[1], [0], [0], [1], [0, 0, 1, 1], [], []>} : vector<16x32xf32>, vector<32x64xf32>, vector<16x64xf32> -> vector<16x64xf32>
    %cst_7 = arith.constant 0.000000e+00 : f32
    %6 = vector.broadcast %cst_7 : f32 to vector<1x64xf32>
    %7 = tpu.concatenate %6, %5, %6 in 0 : vector<1x64xf32>, vector<16x64xf32>, vector<1x64xf32> -> vector<18x64xf32>
    %cst_8 = arith.constant 0.000000e+00 : f32
    %8 = vector.broadcast %cst_8 : f32 to vector<16x128xf32>
    %9 = vector.extract_strided_slice %7 {offsets = [0, 0], sizes = [16, 64], strides = [1, 1]} : vector<18x64xf32> to vector<16x64xf32>
    %c0_9 = arith.constant 0 : index
    %c0_10 = arith.constant 0 : index
    %c0_11 = arith.constant 0 : index
    %10 = vector.load %arg5[%c0_9, %c0_10, %c0_11] : memref<3x64x128xf32, #tpu.memory_space<vmem>>, vector<1x64x128xf32>
    %11 = vector.shape_cast %10 : vector<1x64x128xf32> to vector<64x128xf32>
    %cst_12 = arith.constant dense<0.000000e+00> : vector<16x128xf32>
    %12 = tpu.matmul %9, %11, %cst_12 {dimension_numbers = #tpu.dot_dimension_numbers<[1], [0], [0], [1], [0, 0, 1, 1], [], []>} : vector<16x64xf32>, vector<64x128xf32>, vector<16x128xf32> -> vector<16x128xf32>
    %13 = arith.addf %8, %12 : vector<16x128xf32>
    %14 = vector.extract_strided_slice %7 {offsets = [1, 0], sizes = [16, 64], strides = [1, 1]} : vector<18x64xf32> to vector<16x64xf32>
    %c1 = arith.constant 1 : index
    %c0_13 = arith.constant 0 : index
    %c0_14 = arith.constant 0 : index
    %15 = vector.load %arg5[%c1, %c0_13, %c0_14] : memref<3x64x128xf32, #tpu.memory_space<vmem>>, vector<1x64x128xf32>
    %16 = vector.shape_cast %15 : vector<1x64x128xf32> to vector<64x128xf32>
    %cst_15 = arith.constant dense<0.000000e+00> : vector<16x128xf32>
    %17 = tpu.matmul %14, %16, %cst_15 {dimension_numbers = #tpu.dot_dimension_numbers<[1], [0], [0], [1], [0, 0, 1, 1], [], []>} : vector<16x64xf32>, vector<64x128xf32>, vector<16x128xf32> -> vector<16x128xf32>
    %18 = arith.addf %13, %17 : vector<16x128xf32>
    %19 = vector.extract_strided_slice %7 {offsets = [2, 0], sizes = [16, 64], strides = [1, 1]} : vector<18x64xf32> to vector<16x64xf32>
    %c2 = arith.constant 2 : index
    %c0_16 = arith.constant 0 : index
    %c0_17 = arith.constant 0 : index
    %20 = vector.load %arg5[%c2, %c0_16, %c0_17] : memref<3x64x128xf32, #tpu.memory_space<vmem>>, vector<1x64x128xf32>
    %21 = vector.shape_cast %20 : vector<1x64x128xf32> to vector<64x128xf32>
    %cst_18 = arith.constant dense<0.000000e+00> : vector<16x128xf32>
    %22 = tpu.matmul %19, %21, %cst_18 {dimension_numbers = #tpu.dot_dimension_numbers<[1], [0], [0], [1], [0, 0, 1, 1], [], []>} : vector<16x64xf32>, vector<64x128xf32>, vector<16x128xf32> -> vector<16x128xf32>
    %23 = arith.addf %18, %22 : vector<16x128xf32>
    %c0_19 = arith.constant 0 : index
    %c0_20 = arith.constant 0 : index
    %c0_21 = arith.constant 0 : index
    %24 = vector.load %arg2[%c0_19, %c0_20, %c0_21] : memref<1x16x64xf32, #tpu.memory_space<vmem>>, vector<1x16x64xf32>
    %25 = vector.shape_cast %24 : vector<1x16x64xf32> to vector<16x64xf32>
    %cst_22 = arith.constant 0.000000e+00 : f32
    %26 = vector.broadcast %cst_22 : f32 to vector<1x64xf32>
    %27 = tpu.concatenate %26, %25, %26 in 0 : vector<1x64xf32>, vector<16x64xf32>, vector<1x64xf32> -> vector<18x64xf32>
    %28 = vector.extract_strided_slice %27 {offsets = [0, 0], sizes = [16, 64], strides = [1, 1]} : vector<18x64xf32> to vector<16x64xf32>
    %c0_23 = arith.constant 0 : index
    %c0_24 = arith.constant 0 : index
    %c0_25 = arith.constant 0 : index
    %29 = vector.load %arg6[%c0_23, %c0_24, %c0_25] : memref<3x64x128xf32, #tpu.memory_space<vmem>>, vector<1x64x128xf32>
    %30 = vector.shape_cast %29 : vector<1x64x128xf32> to vector<64x128xf32>
    %cst_26 = arith.constant dense<0.000000e+00> : vector<16x128xf32>
    %31 = tpu.matmul %28, %30, %cst_26 {dimension_numbers = #tpu.dot_dimension_numbers<[1], [0], [0], [1], [0, 0, 1, 1], [], []>} : vector<16x64xf32>, vector<64x128xf32>, vector<16x128xf32> -> vector<16x128xf32>
    %32 = arith.addf %23, %31 : vector<16x128xf32>
    %33 = vector.extract_strided_slice %27 {offsets = [1, 0], sizes = [16, 64], strides = [1, 1]} : vector<18x64xf32> to vector<16x64xf32>
    %c1_27 = arith.constant 1 : index
    %c0_28 = arith.constant 0 : index
    %c0_29 = arith.constant 0 : index
    %34 = vector.load %arg6[%c1_27, %c0_28, %c0_29] : memref<3x64x128xf32, #tpu.memory_space<vmem>>, vector<1x64x128xf32>
    %35 = vector.shape_cast %34 : vector<1x64x128xf32> to vector<64x128xf32>
    %cst_30 = arith.constant dense<0.000000e+00> : vector<16x128xf32>
    %36 = tpu.matmul %33, %35, %cst_30 {dimension_numbers = #tpu.dot_dimension_numbers<[1], [0], [0], [1], [0, 0, 1, 1], [], []>} : vector<16x64xf32>, vector<64x128xf32>, vector<16x128xf32> -> vector<16x128xf32>
    %37 = arith.addf %32, %36 : vector<16x128xf32>
    %38 = vector.extract_strided_slice %27 {offsets = [2, 0], sizes = [16, 64], strides = [1, 1]} : vector<18x64xf32> to vector<16x64xf32>
    %c2_31 = arith.constant 2 : index
    %c0_32 = arith.constant 0 : index
    %c0_33 = arith.constant 0 : index
    %39 = vector.load %arg6[%c2_31, %c0_32, %c0_33] : memref<3x64x128xf32, #tpu.memory_space<vmem>>, vector<1x64x128xf32>
    %40 = vector.shape_cast %39 : vector<1x64x128xf32> to vector<64x128xf32>
    %cst_34 = arith.constant dense<0.000000e+00> : vector<16x128xf32>
    %41 = tpu.matmul %38, %40, %cst_34 {dimension_numbers = #tpu.dot_dimension_numbers<[1], [0], [0], [1], [0, 0, 1, 1], [], []>} : vector<16x64xf32>, vector<64x128xf32>, vector<16x128xf32> -> vector<16x128xf32>
    %42 = arith.addf %37, %41 : vector<16x128xf32>
    %c0_35 = arith.constant 0 : index
    %c0_36 = arith.constant 0 : index
    %43 = vector.load %arg8[%c0_35, %c0_36] : memref<1x128xf32, #tpu.memory_space<vmem>>, vector<1x128xf32>
    %44 = vector.broadcast %43 : vector<1x128xf32> to vector<16x128xf32>
    %45 = arith.mulf %42, %44 : vector<16x128xf32>
    %c0_37 = arith.constant 0 : index
    %c0_38 = arith.constant 0 : index
    %46 = vector.load %arg9[%c0_37, %c0_38] : memref<1x128xf32, #tpu.memory_space<vmem>>, vector<1x128xf32>
    %47 = vector.broadcast %46 : vector<1x128xf32> to vector<16x128xf32>
    %48 = arith.addf %45, %47 : vector<16x128xf32>
    %cst_39 = arith.constant 0.000000e+00 : f32
    %49 = vector.broadcast %cst_39 : f32 to vector<16x128xf32>
    %50 = arith.maximumf %48, %49 : vector<16x128xf32>
    %cst_40 = arith.constant 0.000000e+00 : f32
    %51 = vector.broadcast %cst_40 : f32 to vector<1x128xf32>
    %52 = tpu.concatenate %51, %50, %51 in 0 : vector<1x128xf32>, vector<16x128xf32>, vector<1x128xf32> -> vector<18x128xf32>
    %cst_41 = arith.constant 0.000000e+00 : f32
    %53 = vector.broadcast %cst_41 : f32 to vector<16x128xf32>
    %54 = vector.extract_strided_slice %52 {offsets = [0, 0], sizes = [16, 128], strides = [1, 1]} : vector<18x128xf32> to vector<16x128xf32>
    %c0_42 = arith.constant 0 : index
    %c0_43 = arith.constant 0 : index
    %c0_44 = arith.constant 0 : index
    %55 = vector.load %arg7[%c0_42, %c0_43, %c0_44] : memref<3x128x128xf32, #tpu.memory_space<vmem>>, vector<1x128x128xf32>
    %56 = vector.shape_cast %55 : vector<1x128x128xf32> to vector<128x128xf32>
    %cst_45 = arith.constant dense<0.000000e+00> : vector<16x128xf32>
    %57 = tpu.matmul %54, %56, %cst_45 {dimension_numbers = #tpu.dot_dimension_numbers<[1], [0], [0], [1], [0, 0, 1, 1], [], []>} : vector<16x128xf32>, vector<128x128xf32>, vector<16x128xf32> -> vector<16x128xf32>
    %58 = arith.addf %53, %57 : vector<16x128xf32>
    %59 = vector.extract_strided_slice %52 {offsets = [1, 0], sizes = [16, 128], strides = [1, 1]} : vector<18x128xf32> to vector<16x128xf32>
    %c1_46 = arith.constant 1 : index
    %c0_47 = arith.constant 0 : index
    %c0_48 = arith.constant 0 : index
    %60 = vector.load %arg7[%c1_46, %c0_47, %c0_48] : memref<3x128x128xf32, #tpu.memory_space<vmem>>, vector<1x128x128xf32>
    %61 = vector.shape_cast %60 : vector<1x128x128xf32> to vector<128x128xf32>
    %cst_49 = arith.constant dense<0.000000e+00> : vector<16x128xf32>
    %62 = tpu.matmul %59, %61, %cst_49 {dimension_numbers = #tpu.dot_dimension_numbers<[1], [0], [0], [1], [0, 0, 1, 1], [], []>} : vector<16x128xf32>, vector<128x128xf32>, vector<16x128xf32> -> vector<16x128xf32>
    %63 = arith.addf %58, %62 : vector<16x128xf32>
    %64 = vector.extract_strided_slice %52 {offsets = [2, 0], sizes = [16, 128], strides = [1, 1]} : vector<18x128xf32> to vector<16x128xf32>
    %c2_50 = arith.constant 2 : index
    %c0_51 = arith.constant 0 : index
    %c0_52 = arith.constant 0 : index
    %65 = vector.load %arg7[%c2_50, %c0_51, %c0_52] : memref<3x128x128xf32, #tpu.memory_space<vmem>>, vector<1x128x128xf32>
    %66 = vector.shape_cast %65 : vector<1x128x128xf32> to vector<128x128xf32>
    %cst_53 = arith.constant dense<0.000000e+00> : vector<16x128xf32>
    %67 = tpu.matmul %64, %66, %cst_53 {dimension_numbers = #tpu.dot_dimension_numbers<[1], [0], [0], [1], [0, 0, 1, 1], [], []>} : vector<16x128xf32>, vector<128x128xf32>, vector<16x128xf32> -> vector<16x128xf32>
    %68 = arith.addf %63, %67 : vector<16x128xf32>
    %c0_54 = arith.constant 0 : index
    %c0_55 = arith.constant 0 : index
    %69 = vector.load %arg10[%c0_54, %c0_55] : memref<1x128xf32, #tpu.memory_space<vmem>>, vector<1x128xf32>
    %70 = vector.broadcast %69 : vector<1x128xf32> to vector<16x128xf32>
    %71 = arith.mulf %68, %70 : vector<16x128xf32>
    %c0_56 = arith.constant 0 : index
    %c0_57 = arith.constant 0 : index
    %72 = vector.load %arg11[%c0_56, %c0_57] : memref<1x128xf32, #tpu.memory_space<vmem>>, vector<1x128xf32>
    %73 = vector.broadcast %72 : vector<1x128xf32> to vector<16x128xf32>
    %74 = arith.addf %71, %73 : vector<16x128xf32>
    %cst_58 = arith.constant 0.000000e+00 : f32
    %75 = vector.broadcast %cst_58 : f32 to vector<16x128xf32>
    %76 = arith.maximumf %74, %75 : vector<16x128xf32>
    %c0_59 = arith.constant 0 : index
    %c0_60 = arith.constant 0 : index
    %c0_61 = arith.constant 0 : index
    %77 = vector.load %arg12[%c0_59, %c0_60, %c0_61] : memref<1x16x128xf32, #tpu.memory_space<vmem>>, vector<1x16x128xf32>
    %78 = vector.shape_cast %77 : vector<1x16x128xf32> to vector<16x128xf32>
    %79 = vector.shape_cast %76 : vector<16x128xf32> to vector<1x16x128xf32>
    tpu.vector_store %arg12[%c0_59, %c0_60, %c0_61], %79 {strides = array<i32>} : memref<1x16x128xf32, #tpu.memory_space<vmem>>, vector<1x16x128xf32>,
    return
  }
  func.func @transform_0(%arg0: i32) -> (i32, i32, i32) {
    %c0_i32 = arith.constant 0 : i32
    %c0_i32_0 = arith.constant 0 : i32
    %c0_i32_1 = arith.constant 0 : i32
    return %arg0, %c0_i32, %c0_i32_0 : i32, i32, i32
  }
  func.func @transform_1(%arg0: i32) -> (i32, i32, i32) {
    %c0_i32 = arith.constant 0 : i32
    %c0_i32_0 = arith.constant 0 : i32
    %c0_i32_1 = arith.constant 0 : i32
    return %arg0, %c0_i32, %c0_i32_0 : i32, i32, i32
  }
  func.func @transform_2(%arg0: i32) -> (i32, i32) {
    %c0_i32 = arith.constant 0 : i32
    %c0_i32_0 = arith.constant 0 : i32
    %c0_i32_1 = arith.constant 0 : i32
    return %c0_i32, %c0_i32_0 : i32, i32
  }
  func.func @transform_3(%arg0: i32) -> (i32, i32) {
    %c0_i32 = arith.constant 0 : i32
    %c0_i32_0 = arith.constant 0 : i32
    %c0_i32_1 = arith.constant 0 : i32
    return %c0_i32, %c0_i32_0 : i32, i32
  }
  func.func @transform_4(%arg0: i32) -> (i32, i32, i32) {
    %c0_i32 = arith.constant 0 : i32
    %c0_i32_0 = arith.constant 0 : i32
    %c0_i32_1 = arith.constant 0 : i32
    %c0_i32_2 = arith.constant 0 : i32
    return %c0_i32, %c0_i32_0, %c0_i32_1 : i32, i32, i32
  }
  func.func @transform_5(%arg0: i32) -> (i32, i32, i32) {
    %c0_i32 = arith.constant 0 : i32
    %c0_i32_0 = arith.constant 0 : i32
    %c0_i32_1 = arith.constant 0 : i32
    %c0_i32_2 = arith.constant 0 : i32
    return %c0_i32, %c0_i32_0, %c0_i32_1 : i32, i32, i32
  }
  func.func @transform_6(%arg0: i32) -> (i32, i32, i32) {
    %c0_i32 = arith.constant 0 : i32
    %c0_i32_0 = arith.constant 0 : i32
    %c0_i32_1 = arith.constant 0 : i32
    %c0_i32_2 = arith.constant 0 : i32
    return %c0_i32, %c0_i32_0, %c0_i32_1 : i32, i32, i32
  }
  func.func @transform_7(%arg0: i32) -> (i32, i32) {
    %c0_i32 = arith.constant 0 : i32
    %c0_i32_0 = arith.constant 0 : i32
    %c0_i32_1 = arith.constant 0 : i32
    return %c0_i32, %c0_i32_0 : i32, i32
  }
  func.func @transform_8(%arg0: i32) -> (i32, i32) {
    %c0_i32 = arith.constant 0 : i32
    %c0_i32_0 = arith.constant 0 : i32
    %c0_i32_1 = arith.constant 0 : i32
    return %c0_i32, %c0_i32_0 : i32, i32
  }
  func.func @transform_9(%arg0: i32) -> (i32, i32) {
    %c0_i32 = arith.constant 0 : i32
    %c0_i32_0 = arith.constant 0 : i32
    %c0_i32_1 = arith.constant 0 : i32
    return %c0_i32, %c0_i32_0 : i32, i32
  }
  func.func @transform_10(%arg0: i32) -> (i32, i32) {
    %c0_i32 = arith.constant 0 : i32
    %c0_i32_0 = arith.constant 0 : i32
    %c0_i32_1 = arith.constant 0 : i32
    return %c0_i32, %c0_i32_0 : i32, i32
  }
  func.func @transform_11(%arg0: i32) -> (i32, i32, i32) {
    %c0_i32 = arith.constant 0 : i32
    %c0_i32_0 = arith.constant 0 : i32
    %c0_i32_1 = arith.constant 0 : i32
    return %arg0, %c0_i32, %c0_i32_0 : i32, i32, i32
  }
}

</mosaic_0001>

<llo_original>
// kernel: tpu_custom_call.1
$region0: #{tpu_custom_call.1}
  #allocation0 [shape = 'u32[]', space=smem, size = 0x4, offset = 0x4, fixed_abs, tag = 'smem constant byte address 0x4 - core index']
  #allocation1 [shape = 'u32[72,128]{1,0:T(1,128)}', space=vmem, size = 0x9000, scoped, tag = 'internal scratch']
  %s0 = inlined_call_operand.vmem [shape: f32[2,8,32], index: 0, kind: input, shape index: {}]
  %s1 = inlined_call_operand.hbm [shape: f32[2,16,64], index: 1, kind: input, shape index: {}]
  %s2 = inlined_call_operand.vmem [shape: f32[16,8], index: 2, kind: input, shape index: {}]
  %s3 = inlined_call_operand.hbm [shape: f32[32,64], index: 3, kind: input, shape index: {}]
  %s4 = inlined_call_operand.hbm [shape: f32[3,64,128], index: 4, kind: input, shape index: {}]
  %s5 = inlined_call_operand.hbm [shape: f32[3,64,128], index: 5, kind: input, shape index: {}]
  %s6 = inlined_call_operand.hbm [shape: f32[3,128,128], index: 6, kind: input, shape index: {}]
  %s7 = inlined_call_operand.vmem [shape: f32[1,128], index: 7, kind: input, shape index: {}]
  %s8 = inlined_call_operand.vmem [shape: f32[1,128], index: 8, kind: input, shape index: {}]
  %s9 = inlined_call_operand.vmem [shape: f32[1,128], index: 9, kind: input, shape index: {}]
  %s10 = inlined_call_operand.vmem [shape: f32[1,128], index: 10, kind: input, shape index: {}]
  %s11 = inlined_call_operand.hbm [shape: f32[2,16,128], index: 11, kind: output, shape index: {}]
  %s12 = sld [smem:[#allocation0]]
  $region97: #{tpu_custom_call.1} parent=0
    _
  %s14 = ssub.s32 1, %s12
  %s15 = scalar_select 0, %s14, %s12
  $region1: #{tpu_custom_call.1} parent=0
    #allocation2 [shape = 'u8[16384]{0}', space=vmem, size = 0x4000, scoped, tag = 'input window, operand 1']
    #allocation3 [shape = 's32[2]{0}', space=sflag, size = 0x8, scoped, tag = 'scoped memory for tpu_custom_call.1']
    #allocation4 [shape = 's32[2]{0}', space=sflag, size = 0x8, scoped, tag = 'scoped memory for tpu_custom_call.1']
    #allocation5 [shape = 'u8[16384]{0}', space=vmem, size = 0x4000, scoped, tag = 'input window, operand 3, single buffered']
    #allocation6 [shape = 's32[1]{0}', space=sflag, size = 0x4, scoped, tag = 'scoped memory for tpu_custom_call.1']
    #allocation7 [shape = 'u8[98304]{0}', space=vmem, size = 0x18000, scoped, tag = 'input window, operand 4, single buffered']
    #allocation8 [shape = 'u8[98304]{0}', space=vmem, size = 0x18000, scoped, tag = 'input window, operand 5, single buffered']
    #allocation9 [shape = 's32[1]{0}', space=sflag, size = 0x4, scoped, tag = 'scoped memory for tpu_custom_call.1']
    #allocation10 [shape = 'u8[196608]{0}', space=vmem, size = 0x30000, scoped, tag = 'input window, operand 6, single buffered']
    #allocation11 [shape = 'u8[16384]{0}', space=vmem, size = 0x4000, scoped, tag = 'output window, operand 0']
    %16 = vsyncpa [#allocation3], 0
    %s17 = scalar_lea.sflag [#allocation3], 1
    %18 = vsyncpa %s17, 0
    %19 = vsyncpa [#allocation6], 0
    %20 = vsyncpa [#allocation9], 0
    %21 = vsyncpa [#allocation4], 0
    %s22 = scalar_lea.sflag [#allocation4], 1
    %23 = vsyncpa %s22, 0
    loop: start=0, step=1, limit=4
    $region2: #{tpu_custom_call.1} parent=1 // loop_pre_header
      _
    $region3: #{tpu_custom_call.1} parent=1 // loop_header
      %s25 = sphi 0, %s29
      %p26 = scmp.ge.s32.totalorder %s25, 4
      %s35 = sphi 0, %s37
      %s38 = sphi 0, %s35
      %s39 = sphi 0, %s38
      %s55 = sphi 0, %s39
      %s61 = sphi 0, %s63
      %s64 = sphi 0, %s61
      %s65 = sphi 0, %s64
      %s81 = sphi 0, %s65
      %s85 = sphi 0, %s85
      %s87 = sphi 0, %s85
      %s88 = sphi 0, %s87
      %s102 = sphi 0, %s88
      %s106 = sphi 0, %s106
      %s108 = sphi 0, %s106
      %s109 = sphi 0, %s108
      %s123 = sphi 0, %s109
      %s127 = sphi 0, %s127
      %s129 = sphi 0, %s127
      %s130 = sphi 0, %s129
      %s144 = sphi 0, %s130
      %s148 = sphi 0, %s148
      %s150 = sphi 0, %s148
      %s151 = sphi 0, %s150
      %s165 = sphi 0, %s151
      %s169 = sphi 0, %s169
      %s171 = sphi 0, %s169
      %s172 = sphi 0, %s171
      %s186 = sphi 0, %s172
      %s190 = sphi 0, %s190
      %s192 = sphi 0, %s190
      %s193 = sphi 0, %s192
      %s207 = sphi 0, %s193
      %s211 = sphi 0, %s211
      %s213 = sphi 0, %s211
      %s214 = sphi 0, %s213
      %s228 = sphi 0, %s214
      %s232 = sphi 0, %s232
      %s234 = sphi 0, %s232
      %s235 = sphi 0, %s234
      %s249 = sphi 0, %s235
      %s253 = sphi 0, %s253
      %s255 = sphi 0, %s253
      %s256 = sphi 0, %s255
      %s270 = sphi 0, %s256
      %s276 = sphi 0, %s278
      %s279 = sphi 0, %s276
      %s280 = sphi 0, %s279
      %s296 = sphi 0, %s280
    $region4: #{tpu_custom_call.1} parent=1 // loop_header_branch
      %28 = sbr.rel (%p26) target = $region8
    $region5: #{tpu_custom_call.1} parent=1 // loop_body
      %s30 = ssub.s32 %s25, 1
      %s31 = ssub.s32 %s25, 2
      %s32 = sadd.s32 %s25, 1
      %s33 = ssub.s32 %s25, %s32
      %p34 = scmp.eq.s32.totalorder %s33, 0
      %s36 = sadd.s32 %s35, 1
      %s37 = scalar_select %p34, %s35, %s36
      %p40 = pneg %p34
      %p41 = scmp.eq.s32.totalorder %s25, 1
      %p42 = por %p40, %p41
      %p43 = scmp.ne.s32.totalorder %s35, %s38
      %p44 = scmp.eq.s32.totalorder %s25, 0
      %p45 = por %p43, %p44
      %p46 = scmp.ne.s32.totalorder %s35, %s38
      %p47 = scmp.eq.s32.totalorder %s30, 1
      %p48 = por %p46, %p47
      %p49 = scmp.ne.s32.totalorder %s38, %s39
      %p50 = scmp.eq.s32.totalorder %s30, 0
      %p51 = por %p49, %p50
      %p52 = scmp.ne.s32.totalorder %s38, %s39
      %p53 = scmp.eq.s32.totalorder %s31, 1
      %p54 = por %p52, %p53
      %p56 = scmp.ne.s32.totalorder %s39, %s55
      %p57 = scmp.eq.s32.totalorder %s31, 0
      %p58 = por %p56, %p57
      %s59 = ssub.s32 %s25, %s32
      %p60 = scmp.eq.s32.totalorder %s59, 0
      %s62 = sadd.s32 %s61, 1
      %s63 = scalar_select %p60, %s61, %s62
      %p66 = pneg %p60
      %p67 = scmp.eq.s32.totalorder %s25, 1
      %p68 = por %p66, %p67
      %p69 = scmp.ne.s32.totalorder %s61, %s64
      %p70 = scmp.eq.s32.totalorder %s25, 0
      %p71 = por %p69, %p70
      %p72 = scmp.ne.s32.totalorder %s61, %s64
      %p73 = scmp.eq.s32.totalorder %s30, 1
      %p74 = por %p72, %p73
      %p75 = scmp.ne.s32.totalorder %s64, %s65
      %p76 = scmp.eq.s32.totalorder %s30, 0
      %p77 = por %p75, %p76
      %p78 = scmp.ne.s32.totalorder %s64, %s65
      %p79 = scmp.eq.s32.totalorder %s31, 1
      %p80 = por %p78, %p79
      %p82 = scmp.ne.s32.totalorder %s65, %s81
      %p83 = scmp.eq.s32.totalorder %s31, 0
      %p84 = por %p82, %p83
      %s86 = sadd.s32 %s85, 1
      %p89 = scmp.eq.s32.totalorder %s25, 1
      %p90 = scmp.ne.s32.totalorder %s85, %s87
      %p91 = scmp.eq.s32.totalorder %s25, 0
      %p92 = por %p90, %p91
      %p93 = scmp.ne.s32.totalorder %s85, %s87
      %p94 = scmp.eq.s32.totalorder %s30, 1
      %p95 = por %p93, %p94
      %p96 = scmp.ne.s32.totalorder %s87, %s88
      %p97 = scmp.eq.s32.totalorder %s30, 0
      %p98 = por %p96, %p97
      %p99 = scmp.ne.s32.totalorder %s87, %s88
      %p100 = scmp.eq.s32.totalorder %s31, 1
      %p101 = por %p99, %p100
      %p103 = scmp.ne.s32.totalorder %s88, %s102
      %p104 = scmp.eq.s32.totalorder %s31, 0
      %p105 = por %p103, %p104
      %s107 = sadd.s32 %s106, 1
      %p110 = scmp.eq.s32.totalorder %s25, 1
      %p111 = scmp.ne.s32.totalorder %s106, %s108
      %p112 = scmp.eq.s32.totalorder %s25, 0
      %p113 = por %p111, %p112
      %p114 = scmp.ne.s32.totalorder %s106, %s108
      %p115 = scmp.eq.s32.totalorder %s30, 1
      %p116 = por %p114, %p115
      %p117 = scmp.ne.s32.totalorder %s108, %s109
      %p118 = scmp.eq.s32.totalorder %s30, 0
      %p119 = por %p117, %p118
      %p120 = scmp.ne.s32.totalorder %s108, %s109
      %p121 = scmp.eq.s32.totalorder %s31, 1
      %p122 = por %p120, %p121
      %p124 = scmp.ne.s32.totalorder %s109, %s123
      %p125 = scmp.eq.s32.totalorder %s31, 0
      %p126 = por %p124, %p125
      %s128 = sadd.s32 %s127, 1
      %p131 = scmp.eq.s32.totalorder %s25, 1
      %p132 = scmp.ne.s32.totalorder %s127, %s129
      %p133 = scmp.eq.s32.totalorder %s25, 0
      %p134 = por %p132, %p133
      %p135 = scmp.ne.s32.totalorder %s127, %s129
      %p136 = scmp.eq.s32.totalorder %s30, 1
      %p137 = por %p135, %p136
      %p138 = scmp.ne.s32.totalorder %s129, %s130
      %p139 = scmp.eq.s32.totalorder %s30, 0
      %p140 = por %p138, %p139
      %p141 = scmp.ne.s32.totalorder %s129, %s130
      %p142 = scmp.eq.s32.totalorder %s31, 1
      %p143 = por %p141, %p142
      %p145 = scmp.ne.s32.totalorder %s130, %s144
      %p146 = scmp.eq.s32.totalorder %s31, 0
      %p147 = por %p145, %p146
      %s149 = sadd.s32 %s148, 1
      %p152 = scmp.eq.s32.totalorder %s25, 1
      %p153 = scmp.ne.s32.totalorder %s148, %s150
      %p154 = scmp.eq.s32.totalorder %s25, 0
      %p155 = por %p153, %p154
      %p156 = scmp.ne.s32.totalorder %s148, %s150
      %p157 = scmp.eq.s32.totalorder %s30, 1
      %p158 = por %p156, %p157
      %p159 = scmp.ne.s32.totalorder %s150, %s151
      %p160 = scmp.eq.s32.totalorder %s30, 0
      %p161 = por %p159, %p160
      %p162 = scmp.ne.s32.totalorder %s150, %s151
      %p163 = scmp.eq.s32.totalorder %s31, 1
      %p164 = por %p162, %p163
      %p166 = scmp.ne.s32.totalorder %s151, %s165
      %p167 = scmp.eq.s32.totalorder %s31, 0
      %p168 = por %p166, %p167
      %s170 = sadd.s32 %s169, 1
      %p173 = scmp.eq.s32.totalorder %s25, 1
      %p174 = scmp.ne.s32.totalorder %s169, %s171
      %p175 = scmp.eq.s32.totalorder %s25, 0
      %p176 = por %p174, %p175
      %p177 = scmp.ne.s32.totalorder %s169, %s171
      %p178 = scmp.eq.s32.totalorder %s30, 1
      %p179 = por %p177, %p178
      %p180 = scmp.ne.s32.totalorder %s171, %s172
      %p181 = scmp.eq.s32.totalorder %s30, 0
      %p182 = por %p180, %p181
      %p183 = scmp.ne.s32.totalorder %s171, %s172
      %p184 = scmp.eq.s32.totalorder %s31, 1
      %p185 = por %p183, %p184
      %p187 = scmp.ne.s32.totalorder %s172, %s186
      %p188 = scmp.eq.s32.totalorder %s31, 0
      %p189 = por %p187, %p188
      %s191 = sadd.s32 %s190, 1
      %p194 = scmp.eq.s32.totalorder %s25, 1
      %p195 = scmp.ne.s32.totalorder %s190, %s192
      %p196 = scmp.eq.s32.totalorder %s25, 0
      %p197 = por %p195, %p196
      %p198 = scmp.ne.s32.totalorder %s190, %s192
      %p199 = scmp.eq.s32.totalorder %s30, 1
      %p200 = por %p198, %p199
      %p201 = scmp.ne.s32.totalorder %s192, %s193
      %p202 = scmp.eq.s32.totalorder %s30, 0
      %p203 = por %p201, %p202
      %p204 = scmp.ne.s32.totalorder %s192, %s193
      %p205 = scmp.eq.s32.totalorder %s31, 1
      %p206 = por %p204, %p205
      %p208 = scmp.ne.s32.totalorder %s193, %s207
      %p209 = scmp.eq.s32.totalorder %s31, 0
      %p210 = por %p208, %p209
      %s212 = sadd.s32 %s211, 1
      %p215 = scmp.eq.s32.totalorder %s25, 1
      %p216 = scmp.ne.s32.totalorder %s211, %s213
      %p217 = scmp.eq.s32.totalorder %s25, 0
      %p218 = por %p216, %p217
      %p219 = scmp.ne.s32.totalorder %s211, %s213
      %p220 = scmp.eq.s32.totalorder %s30, 1
      %p221 = por %p219, %p220
      %p222 = scmp.ne.s32.totalorder %s213, %s214
      %p223 = scmp.eq.s32.totalorder %s30, 0
      %p224 = por %p222, %p223
      %p225 = scmp.ne.s32.totalorder %s213, %s214
      %p226 = scmp.eq.s32.totalorder %s31, 1
      %p227 = por %p225, %p226
      %p229 = scmp.ne.s32.totalorder %s214, %s228
      %p230 = scmp.eq.s32.totalorder %s31, 0
      %p231 = por %p229, %p230
      %s233 = sadd.s32 %s232, 1
      %p236 = scmp.eq.s32.totalorder %s25, 1
      %p237 = scmp.ne.s32.totalorder %s232, %s234
      %p238 = scmp.eq.s32.totalorder %s25, 0
      %p239 = por %p237, %p238
      %p240 = scmp.ne.s32.totalorder %s232, %s234
      %p241 = scmp.eq.s32.totalorder %s30, 1
      %p242 = por %p240, %p241
      %p243 = scmp.ne.s32.totalorder %s234, %s235
      %p244 = scmp.eq.s32.totalorder %s30, 0
      %p245 = por %p243, %p244
      %p246 = scmp.ne.s32.totalorder %s234, %s235
      %p247 = scmp.eq.s32.totalorder %s31, 1
      %p248 = por %p246, %p247
      %p250 = scmp.ne.s32.totalorder %s235, %s249
      %p251 = scmp.eq.s32.totalorder %s31, 0
      %p252 = por %p250, %p251
      %s254 = sadd.s32 %s253, 1
      %p257 = scmp.eq.s32.totalorder %s25, 1
      %p258 = scmp.ne.s32.totalorder %s253, %s255
      %p259 = scmp.eq.s32.totalorder %s25, 0
      %p260 = por %p258, %p259
      %p261 = scmp.ne.s32.totalorder %s253, %s255
      %p262 = scmp.eq.s32.totalorder %s30, 1
      %p263 = por %p261, %p262
      %p264 = scmp.ne.s32.totalorder %s255, %s256
      %p265 = scmp.eq.s32.totalorder %s30, 0
      %p266 = por %p264, %p265
      %p267 = scmp.ne.s32.totalorder %s255, %s256
      %p268 = scmp.eq.s32.totalorder %s31, 1
      %p269 = por %p267, %p268
      %p271 = scmp.ne.s32.totalorder %s256, %s270
      %p272 = scmp.eq.s32.totalorder %s31, 0
      %p273 = por %p271, %p272
      %s274 = ssub.s32 %s25, %s32
      %p275 = scmp.eq.s32.totalorder %s274, 0
      %s277 = sadd.s32 %s276, 1
      %s278 = scalar_select %p275, %s276, %s277
      %p281 = pneg %p275
      %p282 = scmp.eq.s32.totalorder %s25, 1
      %p283 = por %p281, %p282
      %p284 = scmp.ne.s32.totalorder %s276, %s279
      %p285 = scmp.eq.s32.totalorder %s25, 0
      %p286 = por %p284, %p285
      %p287 = scmp.ne.s32.totalorder %s276, %s279
      %p288 = scmp.eq.s32.totalorder %s30, 1
      %p289 = por %p287, %p288
      %p290 = scmp.ne.s32.totalorder %s279, %s280
      %p291 = scmp.eq.s32.totalorder %s30, 0
      %p292 = por %p290, %p291
      %p293 = scmp.ne.s32.totalorder %s279, %s280
      %p294 = scmp.eq.s32.totalorder %s31, 1
      %p295 = por %p293, %p294
      %p297 = scmp.ne.s32.totalorder %s280, %s296
      %p298 = scmp.eq.s32.totalorder %s31, 0
      %p299 = por %p297, %p298
      %p300 = scmp.le.s32.totalorder 1, %s25
      %p301 = scmp.lt.s32.totalorder %s25, 3
      %p302 = pnand %p300, %p301
      %p303 = pneg %p302
      // Predicated region
      $region9: #{tpu_custom_call.1} parent=5 // pred_check
        _
      $region10: #{tpu_custom_call.1} parent=5 // pred_check_branch
        %305 = sbr.rel (%p302) target = $region12
      $region11: #{tpu_custom_call.1} parent=5 // pred_region
        %s306 = ssub.s32 %s25, 1
        // Predicated region
        $region13: #{tpu_custom_call.1} parent=11 // pred_check
          %p307 = pneg %p98
        $region14: #{tpu_custom_call.1} parent=11 // pred_check_branch
          %309 = sbr.rel (%p307) target = $region16
        $region15: #{tpu_custom_call.1} parent=11 // pred_region
          _
        $region16: #{tpu_custom_call.1} parent=11 // pred_fallthru
          _
        // Predicated region
        $region17: #{tpu_custom_call.1} parent=11 // pred_check
          %p310 = pneg %p119
        $region18: #{tpu_custom_call.1} parent=11 // pred_check_branch
          %312 = sbr.rel (%p310) target = $region20
        $region19: #{tpu_custom_call.1} parent=11 // pred_region
          %314 = vsyncadd [#allocation6], 0
          %s315 = sshll.u32 %s3, 4
          %s316 = int_to_ptr.hbm [resolvable:$true] %s315
          %s317 = sshll.u32 [#allocation5], 4
          %s318 = int_to_ptr.vmem [resolvable:$true] %s317
          %323 = dma.hbm_to_vmem [thread:$0]  %s316, 512, %s318, [#allocation6], 128, 128, 8
        $region20: #{tpu_custom_call.1} parent=11 // pred_fallthru
          _
        // Predicated region
        $region21: #{tpu_custom_call.1} parent=11 // pred_check
          %p324 = pneg %p140
        $region22: #{tpu_custom_call.1} parent=11 // pred_check_branch
          %326 = sbr.rel (%p324) target = $region24
        $region23: #{tpu_custom_call.1} parent=11 // pred_region
          %328 = vsyncadd [#allocation6], 0
          %s329 = sshll.u32 %s4, 4
          %s330 = int_to_ptr.hbm [resolvable:$true] %s329
          %s331 = sshll.u32 [#allocation7], 4
          %s332 = int_to_ptr.vmem [resolvable:$true] %s331
          %337 = dma.hbm_to_vmem [thread:$0]  %s330, 3072, %s332, [#allocation6], 128, 128, 8
        $region24: #{tpu_custom_call.1} parent=11 // pred_fallthru
          _
        // Predicated region
        $region25: #{tpu_custom_call.1} parent=11 // pred_check
          %p338 = pneg %p161
        $region26: #{tpu_custom_call.1} parent=11 // pred_check_branch
          %340 = sbr.rel (%p338) target = $region28
        $region27: #{tpu_custom_call.1} parent=11 // pred_region
          %342 = vsyncadd [#allocation9], 0
          %s343 = sshll.u32 %s5, 4
          %s344 = int_to_ptr.hbm [resolvable:$true] %s343
          %s345 = sshll.u32 [#allocation8], 4
          %s346 = int_to_ptr.vmem [resolvable:$true] %s345
          %351 = dma.hbm_to_vmem [thread:$0]  %s344, 3072, %s346, [#allocation9], 128, 128, 8
        $region28: #{tpu_custom_call.1} parent=11 // pred_fallthru
          _
        // Predicated region
        $region29: #{tpu_custom_call.1} parent=11 // pred_check
          %p352 = pneg %p182
        $region30: #{tpu_custom_call.1} parent=11 // pred_check_branch
          %354 = sbr.rel (%p352) target = $region32
        $region31: #{tpu_custom_call.1} parent=11 // pred_region
          %356 = vsyncadd [#allocation9], 0
          %s357 = sshll.u32 %s6, 4
          %s358 = int_to_ptr.hbm [resolvable:$true] %s357
          %s359 = sshll.u32 [#allocation10], 4
          %s360 = int_to_ptr.vmem [resolvable:$true] %s359
          %365 = dma.hbm_to_vmem [thread:$0]  %s358, 6144, %s360, [#allocation9], 128, 128, 8
        $region32: #{tpu_custom_call.1} parent=11 // pred_fallthru
          _
        // Predicated region
        $region33: #{tpu_custom_call.1} parent=11 // pred_check
          %p366 = pneg %p203
        $region34: #{tpu_custom_call.1} parent=11 // pred_check_branch
          %368 = sbr.rel (%p366) target = $region36
        $region35: #{tpu_custom_call.1} parent=11 // pred_region
          _
        $region36: #{tpu_custom_call.1} parent=11 // pred_fallthru
          _
        // Predicated region
        $region37: #{tpu_custom_call.1} parent=11 // pred_check
          %p369 = pneg %p224
        $region38: #{tpu_custom_call.1} parent=11 // pred_check_branch
          %371 = sbr.rel (%p369) target = $region40
        $region39: #{tpu_custom_call.1} parent=11 // pred_region
          _
        $region40: #{tpu_custom_call.1} parent=11 // pred_fallthru
          _
        // Predicated region
        $region41: #{tpu_custom_call.1} parent=11 // pred_check
          %p372 = pneg %p245
        $region42: #{tpu_custom_call.1} parent=11 // pred_check_branch
          %374 = sbr.rel (%p372) target = $region44
        $region43: #{tpu_custom_call.1} parent=11 // pred_region
          _
        $region44: #{tpu_custom_call.1} parent=11 // pred_fallthru
          _
        // Predicated region
        $region45: #{tpu_custom_call.1} parent=11 // pred_check
          %p375 = pneg %p266
        $region46: #{tpu_custom_call.1} parent=11 // pred_check_branch
          %377 = sbr.rel (%p375) target = $region48
        $region47: #{tpu_custom_call.1} parent=11 // pred_region
          _
        $region48: #{tpu_custom_call.1} parent=11 // pred_fallthru
          _
      $region12: #{tpu_custom_call.1} parent=5 // pred_fallthru
        _
      %p378 = scmp.lt.s32.totalorder %s25, 2
      // Predicated region
      $region49: #{tpu_custom_call.1} parent=5 // pred_check
        %p379 = pneg %p378
      $region50: #{tpu_custom_call.1} parent=5 // pred_check_branch
        %381 = sbr.rel (%p379) target = $region52
      $region51: #{tpu_custom_call.1} parent=5 // pred_region
        // Predicated region
        $region53: #{tpu_custom_call.1} parent=51 // pred_check
          %p382 = pneg %p45
        $region54: #{tpu_custom_call.1} parent=51 // pred_check_branch
          %384 = sbr.rel (%p382) target = $region56
        $region55: #{tpu_custom_call.1} parent=51 // pred_region
          %p385 = scmp.lt.s32.totalorder %s25, 1
          %s386 = scalar_select %p385, %s25, 1
          %s387 = smul.addr %s386, 8
          %s388 = scalar_lea.vmem %s0, %s387
        $region56: #{tpu_custom_call.1} parent=51 // pred_fallthru
          _
        // Predicated region
        $region57: #{tpu_custom_call.1} parent=51 // pred_check
          %p389 = pneg %p71
        $region58: #{tpu_custom_call.1} parent=51 // pred_check_branch
          %391 = sbr.rel (%p389) target = $region60
        $region59: #{tpu_custom_call.1} parent=51 // pred_region
          %s392 = sand.u32 %s61, 1
          %s393 = scalar_lea.sflag [#allocation3], %s392
          %s394 = sand.u32 %s61, 1
          %s395 = smul.addr %s394, 16
          %s396 = scalar_lea.vmem [#allocation2], %s395
          %398 = vsyncadd %s393, 0
          %s399 = smul.addr %s25, 2
          %s400 = smul.addr %s399, 8
          %s401 = scalar_lea.hbm %s1, %s400
          %s402 = sshll.u32 %s401, 4
          %s403 = int_to_ptr.hbm [resolvable:$true] %s402
          %s404 = sshll.u32 %s396, 4
          %s405 = int_to_ptr.vmem [resolvable:$true] %s404
          %410 = dma.hbm_to_vmem [thread:$0]  %s403, 256, %s405, %s393, 128, 128, 8
        $region60: #{tpu_custom_call.1} parent=51 // pred_fallthru
          _
      $region52: #{tpu_custom_call.1} parent=5 // pred_fallthru
        _
      %p411 = scmp.le.s32.totalorder 1, %s25
      %p412 = scmp.lt.s32.totalorder %s25, 3
      %p413 = pnand %p411, %p412
      %p414 = pneg %p413
      // Predicated region
      $region61: #{tpu_custom_call.1} parent=5 // pred_check
        _
      $region62: #{tpu_custom_call.1} parent=5 // pred_check_branch
        %416 = sbr.rel (%p413) target = $region64
      $region63: #{tpu_custom_call.1} parent=5 // pred_region
        %s417 = ssub.s32 %s25, 1
        %s418 = sand.u32 %s64, 1
        %s419 = scalar_lea.sflag [#allocation3], %s418
        %s420 = sand.u32 %s64, 1
        %s421 = smul.addr %s420, 16
        %s422 = scalar_lea.vmem [#allocation2], %s421
        // Predicated region
        $region65: #{tpu_custom_call.1} parent=63 // pred_check
          %p423 = pneg %p77
        $region66: #{tpu_custom_call.1} parent=63 // pred_check_branch
          %425 = sbr.rel (%p423) target = $region68
        $region67: #{tpu_custom_call.1} parent=63 // pred_region
          %427 = dma.done %s419, 256
        $region68: #{tpu_custom_call.1} parent=63 // pred_fallthru
          _
        // Predicated region
        $region69: #{tpu_custom_call.1} parent=63 // pred_check
          %p428 = pneg %p119
        $region70: #{tpu_custom_call.1} parent=63 // pred_check_branch
          %430 = sbr.rel (%p428) target = $region72
        $region71: #{tpu_custom_call.1} parent=63 // pred_region
          %432 = dma.done [#allocation6], 512
        $region72: #{tpu_custom_call.1} parent=63 // pred_fallthru
          _
        // Predicated region
        $region73: #{tpu_custom_call.1} parent=63 // pred_check
          %p433 = pneg %p140
        $region74: #{tpu_custom_call.1} parent=63 // pred_check_branch
          %435 = sbr.rel (%p433) target = $region76
        $region75: #{tpu_custom_call.1} parent=63 // pred_region
          %437 = dma.done [#allocation6], 3072
        $region76: #{tpu_custom_call.1} parent=63 // pred_fallthru
          _
        // Predicated region
        $region77: #{tpu_custom_call.1} parent=63 // pred_check
          %p438 = pneg %p161
        $region78: #{tpu_custom_call.1} parent=63 // pred_check_branch
          %440 = sbr.rel (%p438) target = $region80
        $region79: #{tpu_custom_call.1} parent=63 // pred_region
          %442 = dma.done [#allocation9], 3072
        $region80: #{tpu_custom_call.1} parent=63 // pred_fallthru
          _
        // Predicated region
        $region81: #{tpu_custom_call.1} parent=63 // pred_check
          %p443 = pneg %p182
        $region82: #{tpu_custom_call.1} parent=63 // pred_check_branch
          %445 = sbr.rel (%p443) target = $region84
        $region83: #{tpu_custom_call.1} parent=63 // pred_region
          %447 = dma.done [#allocation9], 6144
        $region84: #{tpu_custom_call.1} parent=63 // pred_fallthru
          _
        %p448 = scmp.lt.s32.totalorder %s30, 1
        %s449 = scalar_select %p448, %s30, 1
        %s450 = smul.addr %s449, 8
        %s451 = scalar_lea.vmem %s0, %s450
        %p452 = pneg %p51
        %p453 = pneg %p48
        %s454 = sand.u32 %s64, 1
        %s455 = scalar_lea.sflag [#allocation3], %s454
        %s456 = sand.u32 %s64, 1
        %s457 = smul.addr %s456, 16
        %s458 = scalar_lea.vmem [#allocation2], %s457
        %p459 = pneg %p77
        %p460 = pneg %p74
        %p461 = pneg %p98
        %p462 = pneg %p95
        %p463 = pneg %p119
        %p464 = pneg %p116
        %p465 = pneg %p140
        %p466 = pneg %p137
        %p467 = pneg %p161
        %p468 = pneg %p158
        %p469 = pneg %p182
        %p470 = pneg %p179
        %p471 = pneg %p203
        %p472 = pneg %p200
        %p473 = pneg %p224
        %p474 = pneg %p221
        %p475 = pneg %p245
        %p476 = pneg %p242
        %p477 = pneg %p266
        %p478 = pneg %p263
        %p479 = pneg %p292
        %p480 = pneg %p289
        %s481 = sand.u32 %s279, 1
        %s482 = scalar_lea.sflag [#allocation4], %s481
        %s483 = sand.u32 %s279, 1
        %s484 = smul.addr %s483, 16
        %s485 = scalar_lea.vmem [#allocation11], %s484
        %p486 = scmp.lt.s32.totalorder %s30, 1
        %s487 = scalar_select %p486, %s30, 1
        %s488 = smul.addr %s487, 8
        %s489 = scalar_lea.vmem %s0, %s488
        %v490 = vld [vmem:[%s2] sm:$0xff]
        %v491 = vld [vmem:[%s2 + $0x8] sm:$0xff]
        %v492 = vld [vmem:[%s489] sm:$0xff]
        %vm493 = vcmask 64512
        %v495 = vsel %vm493, %v490, 0
        %v498 = vsel %vm493, %v491, 0
        %500 = vmatpush.msra.mxu0 0.0
        %501 = vmatpush.msra.mxu0 0.0
        %502 = vmatpush.msra.mxu0 0.0
        %503 = vmatpush.msra.mxu0 0.0
        %504 = vmatpush.msra.mxu0 0.0
        %505 = vmatpush.msra.mxu0 0.0
        %506 = vmatpush.msra.mxu0 0.0
        %507 = vmatpush.msra.mxu0 0.0
        %508 = vmatpush.msra.mxu0 0.0
        %509 = vmatpush.msra.mxu0 0.0
        %510 = vmatpush.msra.mxu0 0.0
        %511 = vmatpush.msra.mxu0 0.0
        %512 = vmatpush.msra.mxu0 0.0
        %513 = vmatpush.msra.mxu0 0.0
        %514 = vmatpush.msra.mxu0 0.0
        %515 = vmatpush.msra.mxu0 %v492
        %516 = vmatmul.f32.gmra.mxu0 %v495
        %v517 = vpop.f32.mrf.mxu0
        %v518 = vadd.f32 0.0, %v517
        %519 = vmatmul.f32.gmra.mxu0 %v498
        %v520 = vpop.f32.mrf.mxu0
        %v521 = vadd.f32 0.0, %v520
        %522 = vdwg.mxu0
        %v523 = vld [vmem:[#allocation5] sm:$0xff]
        %v524 = vld [vmem:[#allocation5 + $0x8] sm:$0xff]
        %v525 = vld [vmem:[#allocation5 + $0x10] sm:$0xff]
        %v526 = vld [vmem:[#allocation5 + $0x18] sm:$0xff]
        %vm527 = vcmask 261120
        %v529 = vsel %vm527, %v518, 0
        %v532 = vsel %vm527, %v521, 0
        %534 = vmatpush.msra.mxu0 0.0
        %535 = vmatpush.msra.mxu0 0.0
        %536 = vmatpush.msra.mxu0 0.0
        %537 = vmatpush.msra.mxu0 0.0
        %538 = vmatpush.msra.mxu0 0.0
        %539 = vmatpush.msra.mxu0 0.0
        %540 = vmatpush.msra.mxu0 0.0
        %541 = vmatpush.msra.mxu0 0.0
        %542 = vmatpush.msra.mxu0 0.0
        %543 = vmatpush.msra.mxu0 0.0
        %544 = vmatpush.msra.mxu0 0.0
        %545 = vmatpush.msra.mxu0 0.0
        %546 = vmatpush.msra.mxu0 %v526
        %547 = vmatpush.msra.mxu0 %v525
        %548 = vmatpush.msra.mxu0 %v524
        %549 = vmatpush.msra.mxu0 %v523
        %550 = vmatmul.f32.gmra.mxu0 %v529
        %v551 = vpop.f32.mrf.mxu0
        %v552 = vadd.f32 0.0, %v551
        %553 = vmatmul.f32.gmra.mxu0 %v532
        %v554 = vpop.f32.mrf.mxu0
        %v555 = vadd.f32 0.0, %v554
        %556 = vdwg.mxu0
        %vm559 = vcmask 1040384
        %v560 = vrot.slane %v552, 7
        %v561 = vrot.slane %v555, 7
        %v562 = vsel %vm559, %v560, %v561
        %v565 = vsel %vm559, 0.0, %v560
        %v566 = vsel %vm559, %v561, 0.0
        %v567 = vld [vmem:[#allocation7] sm:$0xff]
        %v568 = vld [vmem:[#allocation7 + $0x8] sm:$0xff]
        %v569 = vld [vmem:[#allocation7 + $0x10] sm:$0xff]
        %v570 = vld [vmem:[#allocation7 + $0x18] sm:$0xff]
        %v571 = vld [vmem:[#allocation7 + $0x20] sm:$0xff]
        %v572 = vld [vmem:[#allocation7 + $0x28] sm:$0xff]
        %v573 = vld [vmem:[#allocation7 + $0x30] sm:$0xff]
        %v574 = vld [vmem:[#allocation7 + $0x38] sm:$0xff]
        %s575 = scalar_lea.vmem [#allocation7], 64
        %v576 = vld [vmem:[%s575] sm:$0xff]
        %v577 = vld [vmem:[%s575 + $0x8] sm:$0xff]
        %v578 = vld [vmem:[%s575 + $0x10] sm:$0xff]
        %v579 = vld [vmem:[%s575 + $0x18] sm:$0xff]
        %v580 = vld [vmem:[%s575 + $0x20] sm:$0xff]
        %v581 = vld [vmem:[%s575 + $0x28] sm:$0xff]
        %v582 = vld [vmem:[%s575 + $0x30] sm:$0xff]
        %v583 = vld [vmem:[%s575 + $0x38] sm:$0xff]
        %vm586 = vcmask 1046528
        %v587 = vrot.slane %v565, 1
        %v588 = vrot.slane %v562, 1
        %v589 = vsel %vm586, %v587, %v588
        %v590 = vrot.slane %v566, 1
        %v591 = vsel %vm586, %v588, %v590
        %vm592 = vcmask 523264
        %v593 = vsel %vm592, %v589, 0
        %v595 = vsel %vm592, %v591, 0
        %597 = vmatpush.msra.mxu0 0.0
        %598 = vmatpush.msra.mxu0 0.0
        %599 = vmatpush.msra.mxu0 0.0
        %600 = vmatpush.msra.mxu0 0.0
        %601 = vmatpush.msra.mxu0 0.0
        %602 = vmatpush.msra.mxu0 0.0
        %603 = vmatpush.msra.mxu0 0.0
        %604 = vmatpush.msra.mxu0 0.0
        %605 = vmatpush.msra.mxu0 %v583
        %606 = vmatpush.msra.mxu0 %v582
        %607 = vmatpush.msra.mxu0 %v581
        %608 = vmatpush.msra.mxu0 %v580
        %609 = vmatpush.msra.mxu0 %v579
        %610 = vmatpush.msra.mxu0 %v578
        %611 = vmatpush.msra.mxu0 %v577
        %612 = vmatpush.msra.mxu0 %v576
        %613 = vmatmul.f32.gmra.mxu0 %v593
        %v614 = vpop.f32.mrf.mxu0
        %v615 = vadd.f32 0.0, %v614
        %616 = vmatmul.f32.gmra.mxu0 %v595
        %v617 = vpop.f32.mrf.mxu0
        %v618 = vadd.f32 0.0, %v617
        %619 = vdwg.mxu0
        %v620 = vsel %vm592, %v565, 0
        %v622 = vsel %vm592, %v562, 0
        %624 = vmatpush.msra.mxu0 0.0
        %625 = vmatpush.msra.mxu0 0.0
        %626 = vmatpush.msra.mxu0 0.0
        %627 = vmatpush.msra.mxu0 0.0
        %628 = vmatpush.msra.mxu0 0.0
        %629 = vmatpush.msra.mxu0 0.0
        %630 = vmatpush.msra.mxu0 0.0
        %631 = vmatpush.msra.mxu0 0.0
        %632 = vmatpush.msra.mxu0 %v574
        %633 = vmatpush.msra.mxu0 %v573
        %634 = vmatpush.msra.mxu0 %v572
        %635 = vmatpush.msra.mxu0 %v571
        %636 = vmatpush.msra.mxu0 %v570
        %637 = vmatpush.msra.mxu0 %v569
        %638 = vmatpush.msra.mxu0 %v568
        %639 = vmatpush.msra.mxu0 %v567
        %640 = vmatmul.f32.gmra.mxu0 %v620
        %v641 = vpop.f32.mrf.mxu0
        %v642 = vadd.f32 %v615, %v641
        %643 = vmatmul.f32.gmra.mxu0 %v622
        %v644 = vpop.f32.mrf.mxu0
        %v645 = vadd.f32 %v618, %v644
        %646 = vdwg.mxu0
        %s647 = scalar_lea.vmem [#allocation7], 128
        %v648 = vld [vmem:[%s647] sm:$0xff]
        %v649 = vld [vmem:[%s647 + $0x8] sm:$0xff]
        %v650 = vld [vmem:[%s647 + $0x10] sm:$0xff]
        %v651 = vld [vmem:[%s647 + $0x18] sm:$0xff]
        %v652 = vld [vmem:[%s647 + $0x20] sm:$0xff]
        %v653 = vld [vmem:[%s647 + $0x28] sm:$0xff]
        %v654 = vld [vmem:[%s647 + $0x30] sm:$0xff]
        %v655 = vld [vmem:[%s647 + $0x38] sm:$0xff]
        %vm656 = vcmask 1045504
        %v657 = vrot.slane %v565, 2
        %v658 = vrot.slane %v562, 2
        %v659 = vsel %vm656, %v657, %v658
        %v660 = vrot.slane %v566, 2
        %v661 = vsel %vm656, %v658, %v660
        %v662 = vsel %vm592, %v659, 0
        %v664 = vsel %vm592, %v661, 0
        %666 = vmatpush.msra.mxu0 0.0
        %667 = vmatpush.msra.mxu0 0.0
        %668 = vmatpush.msra.mxu0 0.0
        %669 = vmatpush.msra.mxu0 0.0
        %670 = vmatpush.msra.mxu0 0.0
        %671 = vmatpush.msra.mxu0 0.0
        %672 = vmatpush.msra.mxu0 0.0
        %673 = vmatpush.msra.mxu0 0.0
        %674 = vmatpush.msra.mxu0 %v655
        %675 = vmatpush.msra.mxu0 %v654
        %676 = vmatpush.msra.mxu0 %v653
        %677 = vmatpush.msra.mxu0 %v652
        %678 = vmatpush.msra.mxu0 %v651
        %679 = vmatpush.msra.mxu0 %v650
        %680 = vmatpush.msra.mxu0 %v649
        %681 = vmatpush.msra.mxu0 %v648
        %682 = vmatmul.f32.gmra.mxu0 %v662
        %v683 = vpop.f32.mrf.mxu0
        %v684 = vadd.f32 0.0, %v683
        %685 = vmatmul.f32.gmra.mxu0 %v664
        %v686 = vpop.f32.mrf.mxu0
        %v687 = vadd.f32 0.0, %v686
        %688 = vdwg.mxu0
        %v689 = vadd.f32 %v642, %v684
        %v690 = vadd.f32 %v645, %v687
        %v691 = vld [vmem:[%s422] sm:$0xff]
        %v692 = vld [vmem:[%s422 + $0x8] sm:$0xff]
        %v695 = vrot.slane %v691, 7
        %v696 = vrot.slane %v692, 7
        %v697 = vsel %vm559, %v695, %v696
        %v700 = vsel %vm559, 0.0, %v695
        %v701 = vsel %vm559, %v696, 0.0
        %v702 = vld [vmem:[#allocation8] sm:$0xff]
        %v703 = vld [vmem:[#allocation8 + $0x8] sm:$0xff]
        %v704 = vld [vmem:[#allocation8 + $0x10] sm:$0xff]
        %v705 = vld [vmem:[#allocation8 + $0x18] sm:$0xff]
        %v706 = vld [vmem:[#allocation8 + $0x20] sm:$0xff]
        %v707 = vld [vmem:[#allocation8 + $0x28] sm:$0xff]
        %v708 = vld [vmem:[#allocation8 + $0x30] sm:$0xff]
        %v709 = vld [vmem:[#allocation8 + $0x38] sm:$0xff]
        %v711 = vsel %vm592, %v700, 0
        %v713 = vsel %vm592, %v697, 0
        %715 = vmatpush.msra.mxu0 0.0
        %716 = vmatpush.msra.mxu0 0.0
        %717 = vmatpush.msra.mxu0 0.0
        %718 = vmatpush.msra.mxu0 0.0
        %719 = vmatpush.msra.mxu0 0.0
        %720 = vmatpush.msra.mxu0 0.0
        %721 = vmatpush.msra.mxu0 0.0
        %722 = vmatpush.msra.mxu0 0.0
        %723 = vmatpush.msra.mxu0 %v709
        %724 = vmatpush.msra.mxu0 %v708
        %725 = vmatpush.msra.mxu0 %v707
        %726 = vmatpush.msra.mxu0 %v706
        %727 = vmatpush.msra.mxu0 %v705
        %728 = vmatpush.msra.mxu0 %v704
        %729 = vmatpush.msra.mxu0 %v703
        %730 = vmatpush.msra.mxu0 %v702
        %731 = vmatmul.f32.gmra.mxu0 %v711
        %v732 = vpop.f32.mrf.mxu0
        %v733 = vadd.f32 0.0, %v732
        %734 = vmatmul.f32.gmra.mxu0 %v713
        %v735 = vpop.f32.mrf.mxu0
        %v736 = vadd.f32 0.0, %v735
        %737 = vdwg.mxu0
        %v738 = vadd.f32 %v689, %v733
        %v739 = vadd.f32 %v690, %v736
        %s740 = scalar_lea.vmem [#allocation8], 64
        %v741 = vld [vmem:[%s740] sm:$0xff]
        %v742 = vld [vmem:[%s740 + $0x8] sm:$0xff]
        %v743 = vld [vmem:[%s740 + $0x10] sm:$0xff]
        %v744 = vld [vmem:[%s740 + $0x18] sm:$0xff]
        %v745 = vld [vmem:[%s740 + $0x20] sm:$0xff]
        %v746 = vld [vmem:[%s740 + $0x28] sm:$0xff]
        %v747 = vld [vmem:[%s740 + $0x30] sm:$0xff]
        %v748 = vld [vmem:[%s740 + $0x38] sm:$0xff]
        %v750 = vrot.slane %v700, 1
        %v751 = vrot.slane %v697, 1
        %v752 = vsel %vm586, %v750, %v751
        %v753 = vrot.slane %v701, 1
        %v754 = vsel %vm586, %v751, %v753
        %v755 = vsel %vm592, %v752, 0
        %v757 = vsel %vm592, %v754, 0
        %759 = vmatpush.msra.mxu0 0.0
        %760 = vmatpush.msra.mxu0 0.0
        %761 = vmatpush.msra.mxu0 0.0
        %762 = vmatpush.msra.mxu0 0.0
        %763 = vmatpush.msra.mxu0 0.0
        %764 = vmatpush.msra.mxu0 0.0
        %765 = vmatpush.msra.mxu0 0.0
        %766 = vmatpush.msra.mxu0 0.0
        %767 = vmatpush.msra.mxu0 %v748
        %768 = vmatpush.msra.mxu0 %v747
        %769 = vmatpush.msra.mxu0 %v746
        %770 = vmatpush.msra.mxu0 %v745
        %771 = vmatpush.msra.mxu0 %v744
        %772 = vmatpush.msra.mxu0 %v743
        %773 = vmatpush.msra.mxu0 %v742
        %774 = vmatpush.msra.mxu0 %v741
        %775 = vmatmul.f32.gmra.mxu0 %v755
        %v776 = vpop.f32.mrf.mxu0
        %v777 = vadd.f32 0.0, %v776
        %778 = vmatmul.f32.gmra.mxu0 %v757
        %v779 = vpop.f32.mrf.mxu0
        %v780 = vadd.f32 0.0, %v779
        %781 = vdwg.mxu0
        %v782 = vadd.f32 %v738, %v777
        %v783 = vadd.f32 %v739, %v780
        %s784 = scalar_lea.vmem [#allocation8], 128
        %v785 = vld [vmem:[%s784] sm:$0xff]
        %v786 = vld [vmem:[%s784 + $0x8] sm:$0xff]
        %v787 = vld [vmem:[%s784 + $0x10] sm:$0xff]
        %v788 = vld [vmem:[%s784 + $0x18] sm:$0xff]
        %v789 = vld [vmem:[%s784 + $0x20] sm:$0xff]
        %v790 = vld [vmem:[%s784 + $0x28] sm:$0xff]
        %v791 = vld [vmem:[%s784 + $0x30] sm:$0xff]
        %v792 = vld [vmem:[%s784 + $0x38] sm:$0xff]
        %v793 = vrot.slane %v700, 2
        %v794 = vrot.slane %v697, 2
        %v795 = vsel %vm656, %v793, %v794
        %v796 = vrot.slane %v701, 2
        %v797 = vsel %vm656, %v794, %v796
        %v798 = vsel %vm592, %v795, 0
        %v800 = vsel %vm592, %v797, 0
        %802 = vmatpush.msra.mxu0 0.0
        %803 = vmatpush.msra.mxu0 0.0
        %804 = vmatpush.msra.mxu0 0.0
        %805 = vmatpush.msra.mxu0 0.0
        %806 = vmatpush.msra.mxu0 0.0
        %807 = vmatpush.msra.mxu0 0.0
        %808 = vmatpush.msra.mxu0 0.0
        %809 = vmatpush.msra.mxu0 0.0
        %810 = vmatpush.msra.mxu0 %v792
        %811 = vmatpush.msra.mxu0 %v791
        %812 = vmatpush.msra.mxu0 %v790
        %813 = vmatpush.msra.mxu0 %v789
        %814 = vmatpush.msra.mxu0 %v788
        %815 = vmatpush.msra.mxu0 %v787
        %816 = vmatpush.msra.mxu0 %v786
        %817 = vmatpush.msra.mxu0 %v785
        %818 = vmatmul.f32.gmra.mxu0 %v798
        %v819 = vpop.f32.mrf.mxu0
        %v820 = vadd.f32 0.0, %v819
        %821 = vmatmul.f32.gmra.mxu0 %v800
        %v822 = vpop.f32.mrf.mxu0
        %v823 = vadd.f32 0.0, %v822
        %824 = vdwg.mxu0
        %v825 = vadd.f32 %v782, %v820
        %v826 = vadd.f32 %v783, %v823
        %v827 = vld [vmem:[%s7] sm:$0x1]
        %v829 = vperm.slane %v827, 0
        %v831 = vmul.f32 %v825, %v829
        %v832 = vmul.f32 %v826, %v829
        %v833 = vld [vmem:[%s8] sm:$0x1]
        %v835 = vperm.slane %v833, 0
        %v837 = vadd.f32 %v831, %v835
        %v838 = vadd.f32 %v832, %v835
        %v839 = vmax.f32 %v837, 0.0
        %v840 = vmax.f32 %v838, 0.0
        %v843 = vrot.slane %v839, 7
        %v844 = vrot.slane %v840, 7
        %v845 = vsel %vm559, %v843, %v844
        %v849 = vsel %vm559, 0.0, %v843
        %v850 = vsel %vm559, %v844, 0.0
        %v851 = vld [vmem:[#allocation10] sm:$0xff]
        %v852 = vld [vmem:[#allocation10 + $0x8] sm:$0xff]
        %v853 = vld [vmem:[#allocation10 + $0x10] sm:$0xff]
        %v854 = vld [vmem:[#allocation10 + $0x18] sm:$0xff]
        %v855 = vld [vmem:[#allocation10 + $0x20] sm:$0xff]
        %v856 = vld [vmem:[#allocation10 + $0x28] sm:$0xff]
        %v857 = vld [vmem:[#allocation10 + $0x30] sm:$0xff]
        %v858 = vld [vmem:[#allocation10 + $0x38] sm:$0xff]
        %v859 = vld [vmem:[#allocation10 + $0x40] sm:$0xff]
        %v860 = vld [vmem:[#allocation10 + $0x48] sm:$0xff]
        %v861 = vld [vmem:[#allocation10 + $0x50] sm:$0xff]
        %v862 = vld [vmem:[#allocation10 + $0x58] sm:$0xff]
        %v863 = vld [vmem:[#allocation10 + $0x60] sm:$0xff]
        %v864 = vld [vmem:[#allocation10 + $0x68] sm:$0xff]
        %v865 = vld [vmem:[#allocation10 + $0x70] sm:$0xff]
        %v866 = vld [vmem:[#allocation10 + $0x78] sm:$0xff]
        %s867 = scalar_lea.vmem [#allocation10], 128
        %v868 = vld [vmem:[%s867] sm:$0xff]
        %v869 = vld [vmem:[%s867 + $0x8] sm:$0xff]
        %v870 = vld [vmem:[%s867 + $0x10] sm:$0xff]
        %v871 = vld [vmem:[%s867 + $0x18] sm:$0xff]
        %v872 = vld [vmem:[%s867 + $0x20] sm:$0xff]
        %v873 = vld [vmem:[%s867 + $0x28] sm:$0xff]
        %v874 = vld [vmem:[%s867 + $0x30] sm:$0xff]
        %v875 = vld [vmem:[%s867 + $0x38] sm:$0xff]
        %v876 = vld [vmem:[%s867 + $0x40] sm:$0xff]
        %v877 = vld [vmem:[%s867 + $0x48] sm:$0xff]
        %v878 = vld [vmem:[%s867 + $0x50] sm:$0xff]
        %v879 = vld [vmem:[%s867 + $0x58] sm:$0xff]
        %v880 = vld [vmem:[%s867 + $0x60] sm:$0xff]
        %v881 = vld [vmem:[%s867 + $0x68] sm:$0xff]
        %v882 = vld [vmem:[%s867 + $0x70] sm:$0xff]
        %v883 = vld [vmem:[%s867 + $0x78] sm:$0xff]
        %v886 = vrot.slane %v849, 1
        %v887 = vrot.slane %v845, 1
        %v888 = vsel %vm586, %v886, %v887
        %v889 = vrot.slane %v850, 1
        %v890 = vsel %vm586, %v887, %v889
        %893 = vmatpush.msra.mxu0 %v883
        %894 = vmatpush.msra.mxu0 %v882
        %895 = vmatpush.msra.mxu0 %v881
        %896 = vmatpush.msra.mxu0 %v880
        %897 = vmatpush.msra.mxu0 %v879
        %898 = vmatpush.msra.mxu0 %v878
        %899 = vmatpush.msra.mxu0 %v877
        %900 = vmatpush.msra.mxu0 %v876
        %901 = vmatpush.msra.mxu0 %v875
        %902 = vmatpush.msra.mxu0 %v874
        %903 = vmatpush.msra.mxu0 %v873
        %904 = vmatpush.msra.mxu0 %v872
        %905 = vmatpush.msra.mxu0 %v871
        %906 = vmatpush.msra.mxu0 %v870
        %907 = vmatpush.msra.mxu0 %v869
        %908 = vmatpush.msra.mxu0 %v868
        %909 = vmatmul.f32.gmra.mxu0 %v888
        %v910 = vpop.f32.mrf.mxu0
        %v911 = vadd.f32 0.0, %v910
        %912 = vmatmul.f32.gmra.mxu0 %v890
        %v913 = vpop.f32.mrf.mxu0
        %v914 = vadd.f32 0.0, %v913
        %915 = vdwg.mxu0
        %916 = vmatpush.msra.mxu0 %v866
        %917 = vmatpush.msra.mxu0 %v865
        %918 = vmatpush.msra.mxu0 %v864
        %919 = vmatpush.msra.mxu0 %v863
        %920 = vmatpush.msra.mxu0 %v862
        %921 = vmatpush.msra.mxu0 %v861
        %922 = vmatpush.msra.mxu0 %v860
        %923 = vmatpush.msra.mxu0 %v859
        %924 = vmatpush.msra.mxu0 %v858
        %925 = vmatpush.msra.mxu0 %v857
        %926 = vmatpush.msra.mxu0 %v856
        %927 = vmatpush.msra.mxu0 %v855
        %928 = vmatpush.msra.mxu0 %v854
        %929 = vmatpush.msra.mxu0 %v853
        %930 = vmatpush.msra.mxu0 %v852
        %931 = vmatpush.msra.mxu0 %v851
        %932 = vmatmul.f32.gmra.mxu0 %v849
        %v933 = vpop.f32.mrf.mxu0
        %v934 = vadd.f32 %v911, %v933
        %935 = vmatmul.f32.gmra.mxu0 %v845
        %v936 = vpop.f32.mrf.mxu0
        %v937 = vadd.f32 %v914, %v936
        %938 = vdwg.mxu0
        %s939 = scalar_lea.vmem [#allocation10], 256
        %v940 = vld [vmem:[%s939] sm:$0xff]
        %v941 = vld [vmem:[%s939 + $0x8] sm:$0xff]
        %v942 = vld [vmem:[%s939 + $0x10] sm:$0xff]
        %v943 = vld [vmem:[%s939 + $0x18] sm:$0xff]
        %v944 = vld [vmem:[%s939 + $0x20] sm:$0xff]
        %v945 = vld [vmem:[%s939 + $0x28] sm:$0xff]
        %v946 = vld [vmem:[%s939 + $0x30] sm:$0xff]
        %v947 = vld [vmem:[%s939 + $0x38] sm:$0xff]
        %v948 = vld [vmem:[%s939 + $0x40] sm:$0xff]
        %v949 = vld [vmem:[%s939 + $0x48] sm:$0xff]
        %v950 = vld [vmem:[%s939 + $0x50] sm:$0xff]
        %v951 = vld [vmem:[%s939 + $0x58] sm:$0xff]
        %v952 = vld [vmem:[%s939 + $0x60] sm:$0xff]
        %v953 = vld [vmem:[%s939 + $0x68] sm:$0xff]
        %v954 = vld [vmem:[%s939 + $0x70] sm:$0xff]
        %v955 = vld [vmem:[%s939 + $0x78] sm:$0xff]
        %v956 = vrot.slane %v849, 2
        %v957 = vrot.slane %v845, 2
        %v958 = vsel %vm656, %v956, %v957
        %v959 = vrot.slane %v850, 2
        %v960 = vsel %vm656, %v957, %v959
        %963 = vmatpush.msra.mxu0 %v955
        %964 = vmatpush.msra.mxu0 %v954
        %965 = vmatpush.msra.mxu0 %v953
        %966 = vmatpush.msra.mxu0 %v952
        %967 = vmatpush.msra.mxu0 %v951
        %968 = vmatpush.msra.mxu0 %v950
        %969 = vmatpush.msra.mxu0 %v949
        %970 = vmatpush.msra.mxu0 %v948
        %971 = vmatpush.msra.mxu0 %v947
        %972 = vmatpush.msra.mxu0 %v946
        %973 = vmatpush.msra.mxu0 %v945
        %974 = vmatpush.msra.mxu0 %v944
        %975 = vmatpush.msra.mxu0 %v943
        %976 = vmatpush.msra.mxu0 %v942
        %977 = vmatpush.msra.mxu0 %v941
        %978 = vmatpush.msra.mxu0 %v940
        %979 = vmatmul.f32.gmra.mxu0 %v958
        %v980 = vpop.f32.mrf.mxu0
        %v981 = vadd.f32 0.0, %v980
        %982 = vmatmul.f32.gmra.mxu0 %v960
        %v983 = vpop.f32.mrf.mxu0
        %v984 = vadd.f32 0.0, %v983
        %985 = vdwg.mxu0
        %v986 = vadd.f32 %v934, %v981
        %v987 = vadd.f32 %v937, %v984
        %v988 = vld [vmem:[%s9] sm:$0x1]
        %v990 = vperm.slane %v988, 0
        %v992 = vmul.f32 %v986, %v990
        %v993 = vmul.f32 %v987, %v990
        %v994 = vld [vmem:[%s10] sm:$0x1]
        %v996 = vperm.slane %v994, 0
        %v998 = vadd.f32 %v992, %v996
        %v999 = vadd.f32 %v993, %v996
        %v1000 = vmax.f32 %v998, 0.0
        %v1001 = vmax.f32 %v999, 0.0
        %1002 = vst [vmem:[%s485] sm:$0xff] %v1000
        %1003 = vst [vmem:[%s485 + $0x8] sm:$0xff] %v1001
        %s1004 = sand.u32 %s279, 1
        %s1005 = scalar_lea.sflag [#allocation4], %s1004
        %s1006 = sand.u32 %s279, 1
        %s1007 = smul.addr %s1006, 16
        %s1008 = scalar_lea.vmem [#allocation11], %s1007
        // Predicated region
        $region85: #{tpu_custom_call.1} parent=63 // pred_check
          %p1009 = pneg %p289
        $region86: #{tpu_custom_call.1} parent=63 // pred_check_branch
          %1011 = sbr.rel (%p1009) target = $region88
        $region87: #{tpu_custom_call.1} parent=63 // pred_region
          %1013 = vsyncadd %s1005, 0
          %s1014 = smul.addr %s30, 2
          %s1015 = smul.addr %s1014, 8
          %s1016 = scalar_lea.hbm %s11, %s1015
          %s1017 = sshll.u32 %s1008, 4
          %s1018 = int_to_ptr.vmem [resolvable:$true] %s1017
          %s1019 = sshll.u32 %s1016, 4
          %s1020 = int_to_ptr.hbm [resolvable:$true] %s1019
          %1025 = dma.vmem_to_hbm [thread:$0]  %s1018, 256, %s1020, %s1005, 128, 128, 8
        $region88: #{tpu_custom_call.1} parent=63 // pred_fallthru
          _
      $region64: #{tpu_custom_call.1} parent=5 // pred_fallthru
        _
      %p1026 = scmp.le.s32.totalorder 2, %s25
      // Predicated region
      $region89: #{tpu_custom_call.1} parent=5 // pred_check
        %p1027 = pneg %p1026
      $region90: #{tpu_custom_call.1} parent=5 // pred_check_branch
        %1029 = sbr.rel (%p1027) target = $region92
      $region91: #{tpu_custom_call.1} parent=5 // pred_region
        %s1030 = ssub.s32 %s25, 2
        // Predicated region
        $region93: #{tpu_custom_call.1} parent=91 // pred_check
          %p1031 = pneg %p295
        $region94: #{tpu_custom_call.1} parent=91 // pred_check_branch
          %1033 = sbr.rel (%p1031) target = $region96
        $region95: #{tpu_custom_call.1} parent=91 // pred_region
          %s1034 = sand.u32 %s280, 1
          %s1035 = scalar_lea.sflag [#allocation4], %s1034
          %s1036 = sand.u32 %s280, 1
          %s1037 = smul.addr %s1036, 16
          %s1038 = scalar_lea.vmem [#allocation11], %s1037
          %1040 = dma.done %s1035, 256
        $region96: #{tpu_custom_call.1} parent=91 // pred_fallthru
          _
      $region92: #{tpu_custom_call.1} parent=5 // pred_fallthru
        _
    $region6: #{tpu_custom_call.1} parent=1 // loop_footer
      %s29 = sadd.s32 1, %s25
    $region7: #{tpu_custom_call.1} parent=1 // loop_footer_branch
      %24 = sbr.rel target = $region3
    $region8: #{tpu_custom_call.1} parent=1 // loop_exit
      _
    %1041 = vsyncpa [#allocation3], 1
    %s1042 = scalar_lea.sflag [#allocation3], 1
    %1043 = vsyncpa %s1042, 1
    %1044 = vsyncpa [#allocation6], 1
    %1045 = vsyncpa [#allocation9], 1
    %1046 = vsyncpa [#allocation4], 1
    %s1047 = scalar_lea.sflag [#allocation4], 1
    %1048 = vsyncpa %s1047, 1

</llo_original>
